<compile_context>
chip_gen: v5e
topology: v5e:2x2
jax: 0.10.0
libtpu: 0.0.40
codegen_flags: <defaults>
</compile_context>

<pallas_src>
import functools

import jax
import jax.numpy as jnp
from jax.experimental import pallas as pl
from jax.experimental.pallas import tpu as pltpu

# encoder: 784 -> 128 -> 64 -> 12 -> 5 ; decoder: 5 -> 12 -> 64 -> 128 -> 784
LAYER_DIMS = [(28 * 28, 128), (128, 64), (64, 12), (12, 5),
              (5, 12), (12, 64), (64, 128), (128, 28 * 28)]
IN_DIM = 28 * 28      # 784
BOTTLENECK = 5


def _round_up(x, m):
    return (x + m - 1) // m * m


# ----------------------------- kernel ---------------------------------------
def autoencoder_kernel(x_ref, w_enc_ref, b_enc_ref, w_dec_ref, b_dec_ref, o_ref):
    # encoded = x @ W_enc + b_enc        (TB, 784) @ (784, 5) -> (TB, 5)
    h = jnp.dot(x_ref[...], w_enc_ref[...], preferred_element_type=jnp.float32)
    h = h + b_enc_ref[...]
    # decoded = encoded @ W_dec + b_dec  (TB, 5) @ (5, 784) -> (TB, 784)
    y = jnp.dot(h, w_dec_ref[...], preferred_element_type=jnp.float32)
    o_ref[...] = (y + b_dec_ref[...]).astype(o_ref.dtype)


# ----------------------------- wrapper ---------------------------------------
def _fold_affine(ws, bs):
    """Compose y = (((x W0 + b0) W1 + b1) ...) into a single (W, b)."""
    w, b = ws[0], bs[0]
    for wi, bi in zip(ws[1:], bs[1:]):
        b = b @ wi + bi
        w = w @ wi
    return w, b


@functools.partial(jax.jit, static_argnames=("tb",))
def autoencoder_forward(x, params, tb=1024):
    """x: (B, 784) f32.  params: flat list [w1_t (in,out), b1 (1,out), ..., w8_t, b8]."""
    B, F = x.shape
    assert F == IN_DIM, F

    ws = [params[2 * i] for i in range(len(LAYER_DIMS))]
    bs = [params[2 * i + 1] for i in range(len(LAYER_DIMS))]
    w_enc, b_enc = _fold_affine(ws[:4], bs[:4])   # (784, 5), (1, 5)
    w_dec, b_dec = _fold_affine(ws[4:], bs[4:])   # (5, 784), (1, 784)

    # Batch tile: default 1024 rows (multiple of 256 for the v6e/v7x MXU shape);
    # shrink to the (sublane-rounded) batch for small inputs, pad batch to a
    # multiple of the tile so every block is full.
    tb_eff = min(tb, _round_up(B, 8))
    b_pad = _round_up(B, tb_eff)
    x_p = jnp.pad(x, ((0, b_pad - B), (0, 0))) if b_pad != B else x

    out = pl.pallas_call(
        autoencoder_kernel,
        out_shape=jax.ShapeDtypeStruct((b_pad, IN_DIM), jnp.float32),
        grid=(b_pad // tb_eff,),
        in_specs=[
            pl.BlockSpec((tb_eff, IN_DIM), lambda i: (i, 0)),        # x tile
            pl.BlockSpec((IN_DIM, BOTTLENECK), lambda i: (0, 0)),    # W_enc (resident)
            pl.BlockSpec((1, BOTTLENECK), lambda i: (0, 0)),         # b_enc (resident)
            pl.BlockSpec((BOTTLENECK, IN_DIM), lambda i: (0, 0)),    # W_dec (resident)
            pl.BlockSpec((1, IN_DIM), lambda i: (0, 0)),             # b_dec (resident)
        ],
        out_specs=pl.BlockSpec((tb_eff, IN_DIM), lambda i: (i, 0)),
        compiler_params=pltpu.CompilerParams(
            dimension_semantics=("parallel",),   # megacore sharding on v7x
        ),
    )(x_p, w_enc, b_enc, w_dec, b_dec)

    return out[:B] if b_pad != B else out


# ----------------------------- reference / init ------------------------------
def init_params(key):
    """Deterministic PyTorch-style init: U(-1/sqrt(fan_in), 1/sqrt(fan_in)).
    Weights stored already transposed as (in, out); biases as (1, out)."""
    params = []
    for (fan_in, fan_out) in LAYER_DIMS:
        key, kw, kb = jax.random.split(key, 3)
        bound = 1.0 / jnp.sqrt(jnp.float32(fan_in))
        w_t = jax.random.uniform(kw, (fan_in, fan_out), jnp.float32, -bound, bound)
        b = jax.random.uniform(kb, (1, fan_out), jnp.float32, -bound, bound)
        params += [w_t, b]
    return params


def reference_forward(x, params):
    """Layer-by-layer forward, exactly matching the PyTorch module."""
    h = x
    for i in range(len(LAYER_DIMS)):
        h = h @ params[2 * i] + params[2 * i + 1]
    return h


if __name__ == "__main__":
    key = jax.random.PRNGKey(0)
    key, kx = jax.random.split(key)
    params = init_params(key)

    # Small primary test (B=8): single grid step, block == array shape.
    B = 8
    x = jax.random.normal(kx, (B, IN_DIM), jnp.float32)
    out = jax.block_until_ready(autoencoder_forward(x, params))
    ref = reference_forward(x, params)
    assert out.shape == (B, IN_DIM), out.shape
    assert jnp.allclose(out, ref, atol=1e-4, rtol=1e-3), float(jnp.max(jnp.abs(out - ref)))

    # Second test exercises the batch grid + padding path (grid=3, 84 padded rows).
    key, kx2 = jax.random.split(key)
    B2 = 300
    x2 = jax.random.normal(kx2, (B2, IN_DIM), jnp.float32)
    out2 = jax.block_until_ready(autoencoder_forward(x2, params, tb=128))
    ref2 = reference_forward(x2, params)
    assert out2.shape == (B2, IN_DIM), out2.shape
    assert jnp.allclose(out2, ref2, atol=1e-4, rtol=1e-3), float(jnp.max(jnp.abs(out2 - ref2)))

    print("KERNEL_OK")
</pallas_src>

<mosaic_0001>
module attributes {stable_mosaic.version = 11 : i64} {
  func.func @autoencoder_kernel(%arg0: i32, %arg1: memref<8x784xf32, #tpu.memory_space<vmem>>, %arg2: memref<784x5xf32, #tpu.memory_space<vmem>>, %arg3: memref<1x5xf32, #tpu.memory_space<vmem>>, %arg4: memref<5x784xf32, #tpu.memory_space<vmem>>, %arg5: memref<1x784xf32, #tpu.memory_space<vmem>>, %arg6: memref<8x784xf32, #tpu.memory_space<vmem>>) attributes {dimension_semantics = [#tpu.dimension_semantics<parallel>], iteration_bounds = array<i64: 1>, scalar_prefetch = 0 : i64, scratch_operands = 0 : i64, tpu.core_type = #tpu.core_type<tc>, window_params = [{transform_indices = @transform_0, window_bounds = array<i64: 8, 784>}, {pipeline_mode = #tpu.pipeline_mode<synchronous>, transform_indices = @transform_1, window_bounds = array<i64: 784, 5>}, {pipeline_mode = #tpu.pipeline_mode<synchronous>, transform_indices = @transform_2, window_bounds = array<i64: 1, 5>}, {pipeline_mode = #tpu.pipeline_mode<synchronous>, transform_indices = @transform_3, window_bounds = array<i64: 5, 784>}, {pipeline_mode = #tpu.pipeline_mode<synchronous>, transform_indices = @transform_4, window_bounds = array<i64: 1, 784>}, {transform_indices = @transform_5, window_bounds = array<i64: 8, 784>}]} {
    %c0 = arith.constant 0 : index
    %c0_0 = arith.constant 0 : index
    %0 = vector.load %arg1[%c0, %c0_0] : memref<8x784xf32, #tpu.memory_space<vmem>>, vector<8x784xf32>
    %c0_1 = arith.constant 0 : index
    %c0_2 = arith.constant 0 : index
    %1 = vector.load %arg2[%c0_1, %c0_2] : memref<784x5xf32, #tpu.memory_space<vmem>>, vector<784x5xf32>
    %cst = arith.constant dense<0.000000e+00> : vector<8x5xf32>
    %2 = tpu.matmul %0, %1, %cst {dimension_numbers = #tpu.dot_dimension_numbers<[1], [0], [0], [1], [0, 0, 1, 1], [], []>} : vector<8x784xf32>, vector<784x5xf32>, vector<8x5xf32> -> vector<8x5xf32>
    %c0_3 = arith.constant 0 : index
    %c0_4 = arith.constant 0 : index
    %3 = vector.load %arg3[%c0_3, %c0_4] : memref<1x5xf32, #tpu.memory_space<vmem>>, vector<1x5xf32>
    %4 = vector.broadcast %3 : vector<1x5xf32> to vector<8x5xf32>
    %5 = arith.addf %2, %4 : vector<8x5xf32>
    %c0_5 = arith.constant 0 : index
    %c0_6 = arith.constant 0 : index
    %6 = vector.load %arg4[%c0_5, %c0_6] : memref<5x784xf32, #tpu.memory_space<vmem>>, vector<5x784xf32>
    %cst_7 = arith.constant dense<0.000000e+00> : vector<8x784xf32>
    %7 = tpu.matmul %5, %6, %cst_7 {dimension_numbers = #tpu.dot_dimension_numbers<[1], [0], [0], [1], [0, 0, 1, 1], [], []>} : vector<8x5xf32>, vector<5x784xf32>, vector<8x784xf32> -> vector<8x784xf32>
    %c0_8 = arith.constant 0 : index
    %c0_9 = arith.constant 0 : index
    %8 = vector.load %arg5[%c0_8, %c0_9] : memref<1x784xf32, #tpu.memory_space<vmem>>, vector<1x784xf32>
    %9 = vector.broadcast %8 : vector<1x784xf32> to vector<8x784xf32>
    %10 = arith.addf %7, %9 : vector<8x784xf32>
    %c0_10 = arith.constant 0 : index
    %c0_11 = arith.constant 0 : index
    %11 = vector.load %arg6[%c0_10, %c0_11] : memref<8x784xf32, #tpu.memory_space<vmem>>, vector<8x784xf32>
    tpu.vector_store %arg6[%c0_10, %c0_11], %10 {strides = array<i32>} : memref<8x784xf32, #tpu.memory_space<vmem>>, vector<8x784xf32>,
    return
  }
  func.func @transform_0(%arg0: i32) -> (i32, i32) {
    %c0_i32 = arith.constant 0 : i32
    %c0_i32_0 = arith.constant 0 : i32
    return %arg0, %c0_i32 : i32, i32
  }
  func.func @transform_1(%arg0: i32) -> (i32, i32) {
    %c0_i32 = arith.constant 0 : i32
    %c0_i32_0 = arith.constant 0 : i32
    %c0_i32_1 = arith.constant 0 : i32
    return %c0_i32, %c0_i32_0 : i32, i32
  }
  func.func @transform_2(%arg0: i32) -> (i32, i32) {
    %c0_i32 = arith.constant 0 : i32
    %c0_i32_0 = arith.constant 0 : i32
    %c0_i32_1 = arith.constant 0 : i32
    return %c0_i32, %c0_i32_0 : i32, i32
  }
  func.func @transform_3(%arg0: i32) -> (i32, i32) {
    %c0_i32 = arith.constant 0 : i32
    %c0_i32_0 = arith.constant 0 : i32
    %c0_i32_1 = arith.constant 0 : i32
    return %c0_i32, %c0_i32_0 : i32, i32
  }
  func.func @transform_4(%arg0: i32) -> (i32, i32) {
    %c0_i32 = arith.constant 0 : i32
    %c0_i32_0 = arith.constant 0 : i32
    %c0_i32_1 = arith.constant 0 : i32
    return %c0_i32, %c0_i32_0 : i32, i32
  }
  func.func @transform_5(%arg0: i32) -> (i32, i32) {
    %c0_i32 = arith.constant 0 : i32
    %c0_i32_0 = arith.constant 0 : i32
    return %arg0, %c0_i32 : i32, i32
  }
}

</mosaic_0001>

<llo_original>
// kernel: autoencoder_forward.1
$region0: #{autoencoder_forward.1}
  #allocation0 [shape = 'u32[]', space=smem, size = 0x4, offset = 0x4, fixed_abs, tag = 'smem constant byte address 0x4 - core index']
  #allocation1 [shape = 'u32[72,128]{1,0:T(1,128)}', space=vmem, size = 0x9000, scoped, tag = 'internal scratch']
  %s0 = inlined_call_operand.vmem [shape: f32[8,784], index: 0, kind: input, shape index: {}]
  %s1 = inlined_call_operand.vmem [shape: f32[784,5], index: 1, kind: input, shape index: {}]
  %s2 = inlined_call_operand.vmem [shape: f32[1,5], index: 2, kind: input, shape index: {}]
  %s3 = inlined_call_operand.vmem [shape: f32[5,784], index: 3, kind: input, shape index: {}]
  %s4 = inlined_call_operand.vmem [shape: f32[1,784], index: 4, kind: input, shape index: {}]
  %s5 = inlined_call_operand.hbm [shape: f32[8,784], index: 5, kind: output, shape index: {}]
  %s6 = sld [smem:[#allocation0]]
  $region30: #{autoencoder_forward.1} parent=0
    _
  %s8 = ssub.s32 1, %s6
  %s9 = scalar_select 0, %s8, %s6
  $region1: #{autoencoder_forward.1} parent=0
    #allocation2 [shape = 'u8[28672]{0}', space=vmem, size = 0x7000, scoped, tag = 'output window, operand 0, single buffered']
    #allocation3 [shape = 's32[1]{0}', space=sflag, size = 0x4, scoped, tag = 'scoped memory for autoencoder_forward.1']
    %10 = vsyncpa [#allocation3], 0
    // Predicated region
    $region2: #{autoencoder_forward.1} parent=1 // pred_check
      _
    $region3: #{autoencoder_forward.1} parent=1 // pred_check_branch
      %12 = sbr.rel (0) target = $region5
    $region4: #{autoencoder_forward.1} parent=1 // pred_region
      _
    $region5: #{autoencoder_forward.1} parent=1 // pred_fallthru
      _
    // Predicated region
    $region6: #{autoencoder_forward.1} parent=1 // pred_check
      _
    $region7: #{autoencoder_forward.1} parent=1 // pred_check_branch
      %14 = sbr.rel (0) target = $region9
    $region8: #{autoencoder_forward.1} parent=1 // pred_region
      _
    $region9: #{autoencoder_forward.1} parent=1 // pred_fallthru
      _
    // Predicated region
    $region10: #{autoencoder_forward.1} parent=1 // pred_check
      _
    $region11: #{autoencoder_forward.1} parent=1 // pred_check_branch
      %16 = sbr.rel (0) target = $region13
    $region12: #{autoencoder_forward.1} parent=1 // pred_region
      _
    $region13: #{autoencoder_forward.1} parent=1 // pred_fallthru
      _
    // Predicated region
    $region14: #{autoencoder_forward.1} parent=1 // pred_check
      _
    $region15: #{autoencoder_forward.1} parent=1 // pred_check_branch
      %18 = sbr.rel (0) target = $region17
    $region16: #{autoencoder_forward.1} parent=1 // pred_region
      _
    $region17: #{autoencoder_forward.1} parent=1 // pred_fallthru
      _
    // Predicated region
    $region18: #{autoencoder_forward.1} parent=1 // pred_check
      _
    $region19: #{autoencoder_forward.1} parent=1 // pred_check_branch
      %20 = sbr.rel (0) target = $region21
    $region20: #{autoencoder_forward.1} parent=1 // pred_region
      _
    $region21: #{autoencoder_forward.1} parent=1 // pred_fallthru
      _
    %v21 = vld [vmem:[%s0] sm:$0xff]
    %v22 = vld [vmem:[%s0 + $0x8] sm:$0xff]
    %v23 = vld [vmem:[%s0 + $0x10] sm:$0xff]
    %v24 = vld [vmem:[%s0 + $0x18] sm:$0xff]
    %v25 = vld [vmem:[%s0 + $0x20] sm:$0xff]
    %v26 = vld [vmem:[%s0 + $0x28] sm:$0xff]
    %v27 = vld [vmem:[%s0 + $0x30] sm:$0xff]
    %v28 = vld [vmem:[%s1] sm:$0xff]
    %v29 = vld [vmem:[%s1 + $0x8] sm:$0xff]
    %v30 = vld [vmem:[%s1 + $0x10] sm:$0xff]
    %v31 = vld [vmem:[%s1 + $0x18] sm:$0xff]
    %v32 = vld [vmem:[%s1 + $0x20] sm:$0xff]
    %v33 = vld [vmem:[%s1 + $0x28] sm:$0xff]
    %v34 = vld [vmem:[%s1 + $0x30] sm:$0xff]
    %v35 = vld [vmem:[%s1 + $0x38] sm:$0xff]
    %v36 = vld [vmem:[%s1 + $0x40] sm:$0xff]
    %v37 = vld [vmem:[%s1 + $0x48] sm:$0xff]
    %v38 = vld [vmem:[%s1 + $0x50] sm:$0xff]
    %v39 = vld [vmem:[%s1 + $0x58] sm:$0xff]
    %v40 = vld [vmem:[%s1 + $0x60] sm:$0xff]
    %v41 = vld [vmem:[%s1 + $0x68] sm:$0xff]
    %v42 = vld [vmem:[%s1 + $0x70] sm:$0xff]
    %v43 = vld [vmem:[%s1 + $0x78] sm:$0xff]
    %v44 = vld [vmem:[%s1 + $0x80] sm:$0xff]
    %v45 = vld [vmem:[%s1 + $0x88] sm:$0xff]
    %v46 = vld [vmem:[%s1 + $0x90] sm:$0xff]
    %v47 = vld [vmem:[%s1 + $0x98] sm:$0xff]
    %v48 = vld [vmem:[%s1 + $0xa0] sm:$0xff]
    %v49 = vld [vmem:[%s1 + $0xa8] sm:$0xff]
    %v50 = vld [vmem:[%s1 + $0xb0] sm:$0xff]
    %v51 = vld [vmem:[%s1 + $0xb8] sm:$0xff]
    %v52 = vld [vmem:[%s1 + $0xc0] sm:$0xff]
    %v53 = vld [vmem:[%s1 + $0xc8] sm:$0xff]
    %v54 = vld [vmem:[%s1 + $0xd0] sm:$0xff]
    %v55 = vld [vmem:[%s1 + $0xd8] sm:$0xff]
    %v56 = vld [vmem:[%s1 + $0xe0] sm:$0xff]
    %v57 = vld [vmem:[%s1 + $0xe8] sm:$0xff]
    %v58 = vld [vmem:[%s1 + $0xf0] sm:$0xff]
    %v59 = vld [vmem:[%s1 + $0xf8] sm:$0xff]
    %v60 = vld [vmem:[%s1 + $0x100] sm:$0xff]
    %v61 = vld [vmem:[%s1 + $0x108] sm:$0xff]
    %v62 = vld [vmem:[%s1 + $0x110] sm:$0xff]
    %v63 = vld [vmem:[%s1 + $0x118] sm:$0xff]
    %v64 = vld [vmem:[%s1 + $0x120] sm:$0xff]
    %v65 = vld [vmem:[%s1 + $0x128] sm:$0xff]
    %v66 = vld [vmem:[%s1 + $0x130] sm:$0xff]
    %v67 = vld [vmem:[%s1 + $0x138] sm:$0xff]
    %v68 = vld [vmem:[%s1 + $0x140] sm:$0xff]
    %v69 = vld [vmem:[%s1 + $0x148] sm:$0xff]
    %v70 = vld [vmem:[%s1 + $0x150] sm:$0xff]
    %v71 = vld [vmem:[%s1 + $0x158] sm:$0xff]
    %v72 = vld [vmem:[%s1 + $0x160] sm:$0xff]
    %v73 = vld [vmem:[%s1 + $0x168] sm:$0xff]
    %v74 = vld [vmem:[%s1 + $0x170] sm:$0xff]
    %v75 = vld [vmem:[%s1 + $0x178] sm:$0xff]
    %v76 = vld [vmem:[%s1 + $0x180] sm:$0xff]
    %v77 = vld [vmem:[%s1 + $0x188] sm:$0xff]
    %v78 = vld [vmem:[%s1 + $0x190] sm:$0xff]
    %v79 = vld [vmem:[%s1 + $0x198] sm:$0xff]
    %v80 = vld [vmem:[%s1 + $0x1a0] sm:$0xff]
    %v81 = vld [vmem:[%s1 + $0x1a8] sm:$0xff]
    %v82 = vld [vmem:[%s1 + $0x1b0] sm:$0xff]
    %v83 = vld [vmem:[%s1 + $0x1b8] sm:$0xff]
    %v84 = vld [vmem:[%s1 + $0x1c0] sm:$0xff]
    %v85 = vld [vmem:[%s1 + $0x1c8] sm:$0xff]
    %v86 = vld [vmem:[%s1 + $0x1d0] sm:$0xff]
    %v87 = vld [vmem:[%s1 + $0x1d8] sm:$0xff]
    %v88 = vld [vmem:[%s1 + $0x1e0] sm:$0xff]
    %v89 = vld [vmem:[%s1 + $0x1e8] sm:$0xff]
    %v90 = vld [vmem:[%s1 + $0x1f0] sm:$0xff]
    %v91 = vld [vmem:[%s1 + $0x1f8] sm:$0xff]
    %v92 = vld [vmem:[%s1 + $0x200] sm:$0xff]
    %v93 = vld [vmem:[%s1 + $0x208] sm:$0xff]
    %v94 = vld [vmem:[%s1 + $0x210] sm:$0xff]
    %v95 = vld [vmem:[%s1 + $0x218] sm:$0xff]
    %v96 = vld [vmem:[%s1 + $0x220] sm:$0xff]
    %v97 = vld [vmem:[%s1 + $0x228] sm:$0xff]
    %v98 = vld [vmem:[%s1 + $0x230] sm:$0xff]
    %v99 = vld [vmem:[%s1 + $0x238] sm:$0xff]
    %v100 = vld [vmem:[%s1 + $0x240] sm:$0xff]
    %v101 = vld [vmem:[%s1 + $0x248] sm:$0xff]
    %v102 = vld [vmem:[%s1 + $0x250] sm:$0xff]
    %v103 = vld [vmem:[%s1 + $0x258] sm:$0xff]
    %v104 = vld [vmem:[%s1 + $0x260] sm:$0xff]
    %v105 = vld [vmem:[%s1 + $0x268] sm:$0xff]
    %v106 = vld [vmem:[%s1 + $0x270] sm:$0xff]
    %v107 = vld [vmem:[%s1 + $0x278] sm:$0xff]
    %v108 = vld [vmem:[%s1 + $0x280] sm:$0xff]
    %v109 = vld [vmem:[%s1 + $0x288] sm:$0xff]
    %v110 = vld [vmem:[%s1 + $0x290] sm:$0xff]
    %v111 = vld [vmem:[%s1 + $0x298] sm:$0xff]
    %v112 = vld [vmem:[%s1 + $0x2a0] sm:$0xff]
    %v113 = vld [vmem:[%s1 + $0x2a8] sm:$0xff]
    %v114 = vld [vmem:[%s1 + $0x2b0] sm:$0xff]
    %v115 = vld [vmem:[%s1 + $0x2b8] sm:$0xff]
    %v116 = vld [vmem:[%s1 + $0x2c0] sm:$0xff]
    %v117 = vld [vmem:[%s1 + $0x2c8] sm:$0xff]
    %v118 = vld [vmem:[%s1 + $0x2d0] sm:$0xff]
    %v119 = vld [vmem:[%s1 + $0x2d8] sm:$0xff]
    %v120 = vld [vmem:[%s1 + $0x2e0] sm:$0xff]
    %v121 = vld [vmem:[%s1 + $0x2e8] sm:$0xff]
    %v122 = vld [vmem:[%s1 + $0x2f0] sm:$0xff]
    %v123 = vld [vmem:[%s1 + $0x2f8] sm:$0xff]
    %v124 = vld [vmem:[%s1 + $0x300] sm:$0xff]
    %v125 = vld [vmem:[%s1 + $0x308] sm:$0xff]
    %v126 = vld [vmem:[%s2] sm:$0x1]
    %v128 = vperm.slane %v126, 0
    %vm130 = vcmask 130048
    %v132 = vsel %vm130, %v27, 0
    %134 = vmatpush.msra.mxu0 %v43
    %135 = vmatpush.msra.mxu0 %v42
    %136 = vmatpush.msra.mxu0 %v41
    %137 = vmatpush.msra.mxu0 %v40
    %138 = vmatpush.msra.mxu0 %v39
    %139 = vmatpush.msra.mxu0 %v38
    %140 = vmatpush.msra.mxu0 %v37
    %141 = vmatpush.msra.mxu0 %v36
    %142 = vmatpush.msra.mxu0 %v35
    %143 = vmatpush.msra.mxu0 %v34
    %144 = vmatpush.msra.mxu0 %v33
    %145 = vmatpush.msra.mxu0 %v32
    %146 = vmatpush.msra.mxu0 %v31
    %147 = vmatpush.msra.mxu0 %v30
    %148 = vmatpush.msra.mxu0 %v29
    %149 = vmatpush.msra.mxu0 %v28
    %150 = vmatmul.f32.gmra.mxu0 %v21
    %v151 = vpop.f32.mrf.mxu0
    %v152 = vadd.f32 %v128, %v151
    %153 = vdwg.mxu0
    %154 = vmatpush.msra.mxu0 %v59
    %155 = vmatpush.msra.mxu0 %v58
    %156 = vmatpush.msra.mxu0 %v57
    %157 = vmatpush.msra.mxu0 %v56
    %158 = vmatpush.msra.mxu0 %v55
    %159 = vmatpush.msra.mxu0 %v54
    %160 = vmatpush.msra.mxu0 %v53
    %161 = vmatpush.msra.mxu0 %v52
    %162 = vmatpush.msra.mxu0 %v51
    %163 = vmatpush.msra.mxu0 %v50
    %164 = vmatpush.msra.mxu0 %v49
    %165 = vmatpush.msra.mxu0 %v48
    %166 = vmatpush.msra.mxu0 %v47
    %167 = vmatpush.msra.mxu0 %v46
    %168 = vmatpush.msra.mxu0 %v45
    %169 = vmatpush.msra.mxu0 %v44
    %170 = vmatmul.f32.gmra.mxu0 %v22
    %v171 = vpop.f32.mrf.mxu0
    %v172 = vadd.f32 %v152, %v171
    %173 = vdwg.mxu0
    %174 = vmatpush.msra.mxu0 %v75
    %175 = vmatpush.msra.mxu0 %v74
    %176 = vmatpush.msra.mxu0 %v73
    %177 = vmatpush.msra.mxu0 %v72
    %178 = vmatpush.msra.mxu0 %v71
    %179 = vmatpush.msra.mxu0 %v70
    %180 = vmatpush.msra.mxu0 %v69
    %181 = vmatpush.msra.mxu0 %v68
    %182 = vmatpush.msra.mxu0 %v67
    %183 = vmatpush.msra.mxu0 %v66
    %184 = vmatpush.msra.mxu0 %v65
    %185 = vmatpush.msra.mxu0 %v64
    %186 = vmatpush.msra.mxu0 %v63
    %187 = vmatpush.msra.mxu0 %v62
    %188 = vmatpush.msra.mxu0 %v61
    %189 = vmatpush.msra.mxu0 %v60
    %190 = vmatmul.f32.gmra.mxu0 %v23
    %v191 = vpop.f32.mrf.mxu0
    %v192 = vadd.f32 %v172, %v191
    %193 = vdwg.mxu0
    %194 = vmatpush.msra.mxu0 %v91
    %195 = vmatpush.msra.mxu0 %v90
    %196 = vmatpush.msra.mxu0 %v89
    %197 = vmatpush.msra.mxu0 %v88
    %198 = vmatpush.msra.mxu0 %v87
    %199 = vmatpush.msra.mxu0 %v86
    %200 = vmatpush.msra.mxu0 %v85
    %201 = vmatpush.msra.mxu0 %v84
    %202 = vmatpush.msra.mxu0 %v83
    %203 = vmatpush.msra.mxu0 %v82
    %204 = vmatpush.msra.mxu0 %v81
    %205 = vmatpush.msra.mxu0 %v80
    %206 = vmatpush.msra.mxu0 %v79
    %207 = vmatpush.msra.mxu0 %v78
    %208 = vmatpush.msra.mxu0 %v77
    %209 = vmatpush.msra.mxu0 %v76
    %210 = vmatmul.f32.gmra.mxu0 %v24
    %v211 = vpop.f32.mrf.mxu0
    %v212 = vadd.f32 %v192, %v211
    %213 = vdwg.mxu0
    %214 = vmatpush.msra.mxu0 %v107
    %215 = vmatpush.msra.mxu0 %v106
    %216 = vmatpush.msra.mxu0 %v105
    %217 = vmatpush.msra.mxu0 %v104
    %218 = vmatpush.msra.mxu0 %v103
    %219 = vmatpush.msra.mxu0 %v102
    %220 = vmatpush.msra.mxu0 %v101
    %221 = vmatpush.msra.mxu0 %v100
    %222 = vmatpush.msra.mxu0 %v99
    %223 = vmatpush.msra.mxu0 %v98
    %224 = vmatpush.msra.mxu0 %v97
    %225 = vmatpush.msra.mxu0 %v96
    %226 = vmatpush.msra.mxu0 %v95
    %227 = vmatpush.msra.mxu0 %v94
    %228 = vmatpush.msra.mxu0 %v93
    %229 = vmatpush.msra.mxu0 %v92
    %230 = vmatmul.f32.gmra.mxu0 %v25
    %v231 = vpop.f32.mrf.mxu0
    %v232 = vadd.f32 %v212, %v231
    %233 = vdwg.mxu0
    %234 = vmatpush.msra.mxu0 %v123
    %235 = vmatpush.msra.mxu0 %v122
    %236 = vmatpush.msra.mxu0 %v121
    %237 = vmatpush.msra.mxu0 %v120
    %238 = vmatpush.msra.mxu0 %v119
    %239 = vmatpush.msra.mxu0 %v118
    %240 = vmatpush.msra.mxu0 %v117
    %241 = vmatpush.msra.mxu0 %v116
    %242 = vmatpush.msra.mxu0 %v115
    %243 = vmatpush.msra.mxu0 %v114
    %244 = vmatpush.msra.mxu0 %v113
    %245 = vmatpush.msra.mxu0 %v112
    %246 = vmatpush.msra.mxu0 %v111
    %247 = vmatpush.msra.mxu0 %v110
    %248 = vmatpush.msra.mxu0 %v109
    %249 = vmatpush.msra.mxu0 %v108
    %250 = vmatmul.f32.gmra.mxu0 %v26
    %v251 = vpop.f32.mrf.mxu0
    %v252 = vadd.f32 %v232, %v251
    %253 = vdwg.mxu0
    %254 = vmatpush.msra.mxu0 0.0
    %255 = vmatpush.msra.mxu0 0.0
    %256 = vmatpush.msra.mxu0 0.0
    %257 = vmatpush.msra.mxu0 0.0
    %258 = vmatpush.msra.mxu0 0.0
    %259 = vmatpush.msra.mxu0 0.0
    %260 = vmatpush.msra.mxu0 0.0
    %261 = vmatpush.msra.mxu0 0.0
    %262 = vmatpush.msra.mxu0 0.0
    %263 = vmatpush.msra.mxu0 0.0
    %264 = vmatpush.msra.mxu0 0.0
    %265 = vmatpush.msra.mxu0 0.0
    %266 = vmatpush.msra.mxu0 0.0
    %267 = vmatpush.msra.mxu0 0.0
    %268 = vmatpush.msra.mxu0 %v125
    %269 = vmatpush.msra.mxu0 %v124
    %270 = vmatmul.f32.gmra.mxu0 %v132
    %v271 = vpop.f32.mrf.mxu0
    %v272 = vadd.f32 %v252, %v271
    %273 = vdwg.mxu0
    %v274 = vld [vmem:[%s3] sm:$0x1f]
    %v275 = vld [vmem:[%s3 + $0x8] sm:$0x1f]
    %v276 = vld [vmem:[%s3 + $0x10] sm:$0x1f]
    %v277 = vld [vmem:[%s3 + $0x18] sm:$0x1f]
    %v278 = vld [vmem:[%s3 + $0x20] sm:$0x1f]
    %v279 = vld [vmem:[%s3 + $0x28] sm:$0x1f]
    %v280 = vld [vmem:[%s3 + $0x30] sm:$0x1f]
    %v281 = vld [vmem:[%s4] sm:$0x7f]
    %v283 = vperm.slane %v281, 0
    %v284 = vperm.slane %v281, 1
    %v285 = vperm.slane %v281, 2
    %v286 = vperm.slane %v281, 3
    %v287 = vperm.slane %v281, 4
    %v288 = vperm.slane %v281, 5
    %v289 = vperm.slane %v281, 6
    %vm297 = vcmask 39936
    %v299 = vsel %vm297, %v272, 0
    %vm301 = vcmask 1044480
    %v303 = vsel %vm301, %v274, 0
    %v306 = vsel %vm301, %v275, 0
    %v309 = vsel %vm301, %v276, 0
    %v312 = vsel %vm301, %v277, 0
    %v315 = vsel %vm301, %v278, 0
    %v318 = vsel %vm301, %v279, 0
    %v321 = vsel %vm301, %v280, 0
    %323 = vmatpush.msra.mxu0 0.0
    %324 = vmatpush.msra.mxu0 0.0
    %325 = vmatpush.msra.mxu0 0.0
    %326 = vmatpush.msra.mxu0 0.0
    %327 = vmatpush.msra.mxu0 0.0
    %328 = vmatpush.msra.mxu0 0.0
    %329 = vmatpush.msra.mxu0 0.0
    %330 = vmatpush.msra.mxu0 0.0
    %331 = vmatpush.msra.mxu0 0.0
    %332 = vmatpush.msra.mxu0 0.0
    %333 = vmatpush.msra.mxu0 0.0
    %334 = vmatpush.msra.mxu0 0.0
    %335 = vmatpush.msra.mxu0 0.0
    %336 = vmatpush.msra.mxu0 0.0
    %337 = vmatpush.msra.mxu0 0.0
    %338 = vmatpush.msra.mxu0 %v303
    %339 = vmatmul.f32.gmra.mxu0 %v299
    %v340 = vpop.f32.mrf.mxu0
    %v341 = vadd.f32 %v283, %v340
    %342 = vdwg.mxu0
    %343 = vmatpush.msra.mxu0 0.0
    %344 = vmatpush.msra.mxu0 0.0
    %345 = vmatpush.msra.mxu0 0.0
    %346 = vmatpush.msra.mxu0 0.0
    %347 = vmatpush.msra.mxu0 0.0
    %348 = vmatpush.msra.mxu0 0.0
    %349 = vmatpush.msra.mxu0 0.0
    %350 = vmatpush.msra.mxu0 0.0
    %351 = vmatpush.msra.mxu0 0.0
    %352 = vmatpush.msra.mxu0 0.0
    %353 = vmatpush.msra.mxu0 0.0
    %354 = vmatpush.msra.mxu0 0.0
    %355 = vmatpush.msra.mxu0 0.0
    %356 = vmatpush.msra.mxu0 0.0
    %357 = vmatpush.msra.mxu0 0.0
    %358 = vmatpush.msra.mxu0 %v306
    %359 = vmatmul.f32.gmra.mxu0 %v299
    %v360 = vpop.f32.mrf.mxu0
    %v361 = vadd.f32 %v284, %v360
    %362 = vdwg.mxu0
    %363 = vmatpush.msra.mxu0 0.0
    %364 = vmatpush.msra.mxu0 0.0
    %365 = vmatpush.msra.mxu0 0.0
    %366 = vmatpush.msra.mxu0 0.0
    %367 = vmatpush.msra.mxu0 0.0
    %368 = vmatpush.msra.mxu0 0.0
    %369 = vmatpush.msra.mxu0 0.0
    %370 = vmatpush.msra.mxu0 0.0
    %371 = vmatpush.msra.mxu0 0.0
    %372 = vmatpush.msra.mxu0 0.0
    %373 = vmatpush.msra.mxu0 0.0
    %374 = vmatpush.msra.mxu0 0.0
    %375 = vmatpush.msra.mxu0 0.0
    %376 = vmatpush.msra.mxu0 0.0
    %377 = vmatpush.msra.mxu0 0.0
    %378 = vmatpush.msra.mxu0 %v309
    %379 = vmatmul.f32.gmra.mxu0 %v299
    %v380 = vpop.f32.mrf.mxu0
    %v381 = vadd.f32 %v285, %v380
    %382 = vdwg.mxu0
    %383 = vmatpush.msra.mxu0 0.0
    %384 = vmatpush.msra.mxu0 0.0
    %385 = vmatpush.msra.mxu0 0.0
    %386 = vmatpush.msra.mxu0 0.0
    %387 = vmatpush.msra.mxu0 0.0
    %388 = vmatpush.msra.mxu0 0.0
    %389 = vmatpush.msra.mxu0 0.0
    %390 = vmatpush.msra.mxu0 0.0
    %391 = vmatpush.msra.mxu0 0.0
    %392 = vmatpush.msra.mxu0 0.0
    %393 = vmatpush.msra.mxu0 0.0
    %394 = vmatpush.msra.mxu0 0.0
    %395 = vmatpush.msra.mxu0 0.0
    %396 = vmatpush.msra.mxu0 0.0
    %397 = vmatpush.msra.mxu0 0.0
    %398 = vmatpush.msra.mxu0 %v312
    %399 = vmatmul.f32.gmra.mxu0 %v299
    %v400 = vpop.f32.mrf.mxu0
    %v401 = vadd.f32 %v286, %v400
    %402 = vdwg.mxu0
    %403 = vmatpush.msra.mxu0 0.0
    %404 = vmatpush.msra.mxu0 0.0
    %405 = vmatpush.msra.mxu0 0.0
    %406 = vmatpush.msra.mxu0 0.0
    %407 = vmatpush.msra.mxu0 0.0
    %408 = vmatpush.msra.mxu0 0.0
    %409 = vmatpush.msra.mxu0 0.0
    %410 = vmatpush.msra.mxu0 0.0
    %411 = vmatpush.msra.mxu0 0.0
    %412 = vmatpush.msra.mxu0 0.0
    %413 = vmatpush.msra.mxu0 0.0
    %414 = vmatpush.msra.mxu0 0.0
    %415 = vmatpush.msra.mxu0 0.0
    %416 = vmatpush.msra.mxu0 0.0
    %417 = vmatpush.msra.mxu0 0.0
    %418 = vmatpush.msra.mxu0 %v315
    %419 = vmatmul.f32.gmra.mxu0 %v299
    %v420 = vpop.f32.mrf.mxu0
    %v421 = vadd.f32 %v287, %v420
    %422 = vdwg.mxu0
    %423 = vmatpush.msra.mxu0 0.0
    %424 = vmatpush.msra.mxu0 0.0
    %425 = vmatpush.msra.mxu0 0.0
    %426 = vmatpush.msra.mxu0 0.0
    %427 = vmatpush.msra.mxu0 0.0
    %428 = vmatpush.msra.mxu0 0.0
    %429 = vmatpush.msra.mxu0 0.0
    %430 = vmatpush.msra.mxu0 0.0
    %431 = vmatpush.msra.mxu0 0.0
    %432 = vmatpush.msra.mxu0 0.0
    %433 = vmatpush.msra.mxu0 0.0
    %434 = vmatpush.msra.mxu0 0.0
    %435 = vmatpush.msra.mxu0 0.0
    %436 = vmatpush.msra.mxu0 0.0
    %437 = vmatpush.msra.mxu0 0.0
    %438 = vmatpush.msra.mxu0 %v318
    %439 = vmatmul.f32.gmra.mxu0 %v299
    %v440 = vpop.f32.mrf.mxu0
    %v441 = vadd.f32 %v288, %v440
    %442 = vdwg.mxu0
    %443 = vmatpush.msra.mxu0 0.0
    %444 = vmatpush.msra.mxu0 0.0
    %445 = vmatpush.msra.mxu0 0.0
    %446 = vmatpush.msra.mxu0 0.0
    %447 = vmatpush.msra.mxu0 0.0
    %448 = vmatpush.msra.mxu0 0.0
    %449 = vmatpush.msra.mxu0 0.0
    %450 = vmatpush.msra.mxu0 0.0
    %451 = vmatpush.msra.mxu0 0.0
    %452 = vmatpush.msra.mxu0 0.0
    %453 = vmatpush.msra.mxu0 0.0
    %454 = vmatpush.msra.mxu0 0.0
    %455 = vmatpush.msra.mxu0 0.0
    %456 = vmatpush.msra.mxu0 0.0
    %457 = vmatpush.msra.mxu0 0.0
    %458 = vmatpush.msra.mxu0 %v321
    %459 = vmatmul.f32.gmra.mxu0 %v299
    %v460 = vpop.f32.mrf.mxu0
    %v461 = vadd.f32 %v289, %v460
    %462 = vdwg.mxu0
    %463 = vst [vmem:[#allocation2] sm:$0xff] %v341
    %464 = vst [vmem:[#allocation2 + $0x8] sm:$0xff] %v361
    %465 = vst [vmem:[#allocation2 + $0x10] sm:$0xff] %v381
    %466 = vst [vmem:[#allocation2 + $0x18] sm:$0xff] %v401
    %467 = vst [vmem:[#allocation2 + $0x20] sm:$0xff] %v421
    %468 = vst [vmem:[#allocation2 + $0x28] sm:$0xff] %v441
    %469 = vst.msk [vmem:[#allocation2 + $0x30] sm:$0xff] %vm130, %v461
    // Predicated region
    $region22: #{autoencoder_forward.1} parent=1 // pred_check
      _
    $region23: #{autoencoder_forward.1} parent=1 // pred_check_branch
      %471 = sbr.rel (0) target = $region25
    $region24: #{autoencoder_forward.1} parent=1 // pred_region
      %473 = vsyncadd [#allocation3], 0
      %s475 = sshll.u32 [#allocation2], 4
      %s476 = int_to_ptr.vmem [resolvable:$true] %s475
      %s477 = sshll.u32 %s5, 4
      %s478 = int_to_ptr.hbm [resolvable:$true] %s477
      %480 = dma.vmem_to_hbm [thread:$0]  %s476, 896, %s478, [#allocation3]
    $region25: #{autoencoder_forward.1} parent=1 // pred_fallthru
      _
    // Predicated region
    $region26: #{autoencoder_forward.1} parent=1 // pred_check
      _
    $region27: #{autoencoder_forward.1} parent=1 // pred_check_branch
      %482 = sbr.rel (0) target = $region29
    $region28: #{autoencoder_forward.1} parent=1 // pred_region
      %484 = dma.done [#allocation3], 896
    $region29: #{autoencoder_forward.1} parent=1 // pred_fallthru
      _
    %485 = vsyncpa [#allocation3], 1

</llo_original>
